<compile_context>
chip_gen: v5e
topology: v5e:2x2
jax: 0.10.0
libtpu: 0.0.40
codegen_flags: <defaults>
</compile_context>

<pallas_src>
import functools
import math

import jax
import jax.numpy as jnp
from jax.experimental import pallas as pl
from jax.experimental.pallas import tpu as pltpu


def _pe_kernel(inv_freq_ref, parity_ref, pos_off_ref, o_ref, *, pos_per_row):
    """Writes one (TR, W) row-block of the sinusoidal table.

    Each output row holds `pos_per_row` consecutive positions laid out
    row-major (W = pos_per_row * d_model in the lane-dense path, W = d_model
    otherwise). Per-lane constants arrive as (1, W) inputs with a constant
    index_map, so the body is: row iota -> fma -> sin/cos -> select.
    """
    tr = o_ref.shape[0]
    row0 = pl.program_id(0) * tr
    # Absolute row index as an f32 column; broadcasting expands it to (TR, W).
    rowf = (jax.lax.broadcasted_iota(jnp.int32, (tr, 1), 0) + row0).astype(
        jnp.float32)
    pos = rowf * jnp.float32(pos_per_row) + pos_off_ref[...]      # (TR, W)
    angle = pos * inv_freq_ref[...]                               # (TR, W)
    # Exact even/odd select: sin for even columns, cos for odd columns.
    # TODO(synk): on v7x, halve EUP pushes by evaluating sin/cos on a
    # half-width tile and interleaving lanes via the XLU instead of jnp.where.
    val = jnp.where(parity_ref[...] == 0.0, jnp.sin(angle), jnp.cos(angle))
    o_ref[...] = val.astype(o_ref.dtype)


def _round_up(x, m):
    return ((x + m - 1) // m) * m


def _pick_tile_rows(n_rows, row_bytes, vmem_budget_bytes=8 * 1024 * 1024):
    """Rows per output block: VMEM-budgeted, 8-aligned, >=2 balanced tiles."""
    max_tr = max(8, (vmem_budget_bytes // (2 * row_bytes)) // 8 * 8)
    if n_rows <= 8:
        return max(n_rows, 1)            # full-extent block (always legal)
    n_tiles = pl.cdiv(n_rows, max_tr)
    if n_rows >= 16:
        n_tiles = max(n_tiles, 2)        # give v7x's two TCs work to split
    tr = _round_up(pl.cdiv(n_rows, n_tiles), 8)
    return min(tr, n_rows)


def _build_pe_table(seq_len, d_model, dtype=jnp.float32):
    """Builds the (1, seq_len, d_model) sinusoidal table with a tiled kernel."""
    ln10000 = math.log(10000.0)
    lane_dense = (d_model < 128) and (128 % d_model == 0) and (d_model % 2 == 0)

    if lane_dense:
        pos_per_row = 128 // d_model
        width = 128
        n_rows = pl.cdiv(seq_len, pos_per_row)
    else:
        pos_per_row = 1
        width = d_model
        n_rows = seq_len

    # Per-lane constants (computed once per shape, outside the kernel).
    lane = jnp.arange(width, dtype=jnp.int32)
    col = (lane % d_model) if lane_dense else lane
    k2 = (col - (col % 2)).astype(jnp.float32)                    # 2*(j//2)
    inv_freq = jnp.exp(k2 * jnp.float32(-ln10000 / d_model))[None, :]
    parity = (col % 2).astype(jnp.float32)[None, :]
    if lane_dense:
        pos_off = (lane // d_model).astype(jnp.float32)[None, :]
    else:
        pos_off = jnp.zeros((1, width), jnp.float32)

    itemsize = jnp.dtype(dtype).itemsize
    tr = _pick_tile_rows(n_rows, width * itemsize)
    grid = (pl.cdiv(n_rows, tr),)

    row_spec = pl.BlockSpec((1, width), lambda i: (0, 0))
    flat = pl.pallas_call(
        functools.partial(_pe_kernel, pos_per_row=pos_per_row),
        out_shape=jax.ShapeDtypeStruct((n_rows, width), dtype),
        grid=grid,
        in_specs=[row_spec, row_spec, row_spec],
        out_specs=pl.BlockSpec((tr, width), lambda i: (i, 0)),
        compiler_params=pltpu.CompilerParams(
            dimension_semantics=("parallel",),
            vmem_limit_bytes=16 * 1024 * 1024),
    )(inv_freq, parity, pos_off)

    if lane_dense:
        table = flat.reshape(-1)[: seq_len * d_model].reshape(seq_len, d_model)
    else:
        table = flat
    return table[None]  # (1, seq_len, d_model), like the PyTorch buffer slice


# Memoized like PyTorch's registered buffer: output depends only on shapes.
# Note: one table is retained per distinct (seq_len, d_model, dtype); callers
# with many distinct lengths should build once at max_len and slice.
_PE_CACHE = {}


def positional_embedding(x, d_model, dtype=jnp.float32):
    """Equivalent of PositionalEmbedding(d_model).forward(x).

    x: (batch, seq_len, ...) -- only x.shape[1] is used.
    Returns (1, seq_len, d_model) in `dtype` (float32 by default, as in PyTorch).
    """
    seq_len = int(x.shape[1])
    key = (seq_len, int(d_model), jnp.dtype(dtype).name)
    pe = _PE_CACHE.get(key)
    if pe is None:
        pe = _build_pe_table(seq_len, d_model, dtype)
        _PE_CACHE[key] = pe
    return pe


def _pe_reference(seq_len, d_model):
    pos = jnp.arange(seq_len, dtype=jnp.float32)[:, None]
    div_term = jnp.exp(
        jnp.arange(0, d_model, 2, dtype=jnp.float32)
        * (-math.log(10000.0) / d_model))
    pe = jnp.zeros((seq_len, d_model), jnp.float32)
    pe = pe.at[:, 0::2].set(jnp.sin(pos * div_term))
    pe = pe.at[:, 1::2].set(jnp.cos(pos * div_term))
    return pe[None]


if __name__ == "__main__":
    key = jax.random.PRNGKey(0)

    # Small shapes consistent with the module's forward: x is (batch, seq, d).
    batch, seq_len, d_model = 2, 8, 32
    x = jax.random.normal(key, (batch, seq_len, d_model), dtype=jnp.float32)

    out = jax.block_until_ready(positional_embedding(x, d_model))
    ref = _pe_reference(seq_len, d_model)
    assert out.shape == (1, seq_len, d_model), out.shape
    assert jnp.allclose(out, ref, atol=1e-5, rtol=1e-5), "lane-dense path mismatch"

    # Multi-tile lane-dense path (d_model < 128), partial last block.
    seq_len2 = 520
    x2 = jnp.zeros((1, seq_len2, d_model), jnp.float32)
    out2 = jax.block_until_ready(positional_embedding(x2, d_model))
    ref2 = _pe_reference(seq_len2, d_model)
    assert out2.shape == (1, seq_len2, d_model), out2.shape
    assert jnp.allclose(out2, ref2, atol=1e-4, rtol=1e-5), "tiled lane-dense mismatch"

    # 2-D path: d_model a multiple of 128 (naturally lane-dense).
    seq_len3, d_model3 = 40, 128
    x3 = jnp.zeros((1, seq_len3, d_model3), jnp.float32)
    out3 = jax.block_until_ready(positional_embedding(x3, d_model3))
    ref3 = _pe_reference(seq_len3, d_model3)
    assert jnp.allclose(out3, ref3, atol=1e-5, rtol=1e-5), "d_model=128 path mismatch"

    # 2-D fallback path: d_model not dividing 128 (masked-store fallback).
    seq_len4, d_model4 = 24, 96
    x4 = jnp.zeros((1, seq_len4, d_model4), jnp.float32)
    out4 = jax.block_until_ready(positional_embedding(x4, d_model4))
    ref4 = _pe_reference(seq_len4, d_model4)
    assert jnp.allclose(out4, ref4, atol=1e-5, rtol=1e-5), "d_model=96 path mismatch"

    print("KERNEL_OK")
</pallas_src>

<mosaic_0001>
module attributes {stable_mosaic.version = 11 : i64} {
  func.func @_pe_kernel(%arg0: i32, %arg1: memref<1x128xf32, #tpu.memory_space<vmem>>, %arg2: memref<1x128xf32, #tpu.memory_space<vmem>>, %arg3: memref<1x128xf32, #tpu.memory_space<vmem>>, %arg4: memref<2x128xf32, #tpu.memory_space<vmem>>) attributes {dimension_semantics = [#tpu.dimension_semantics<parallel>], iteration_bounds = array<i64: 1>, scalar_prefetch = 0 : i64, scratch_operands = 0 : i64, tpu.core_type = #tpu.core_type<tc>, window_params = [{pipeline_mode = #tpu.pipeline_mode<synchronous>, transform_indices = @transform_0, window_bounds = array<i64: 1, 128>}, {pipeline_mode = #tpu.pipeline_mode<synchronous>, transform_indices = @transform_1, window_bounds = array<i64: 1, 128>}, {pipeline_mode = #tpu.pipeline_mode<synchronous>, transform_indices = @transform_2, window_bounds = array<i64: 1, 128>}, {transform_indices = @transform_3, window_bounds = array<i64: 2, 128>}]} {
    %c2_i32 = arith.constant 2 : i32
    %0 = arith.muli %arg0, %c2_i32 : i32
    %1 = tpu.iota {dimensions = array<i32: 0>} : vector<2x1xi32>
    %2 = vector.broadcast %0 : i32 to vector<2x1xi32>
    %3 = arith.addi %1, %2 : vector<2x1xi32>
    %4 = arith.sitofp %3 : vector<2x1xi32> to vector<2x1xf32>
    %cst = arith.constant 4.000000e+00 : f32
    %5 = vector.broadcast %cst : f32 to vector<2x1xf32>
    %6 = arith.mulf %4, %5 : vector<2x1xf32>
    %c0 = arith.constant 0 : index
    %c0_0 = arith.constant 0 : index
    %7 = vector.load %arg3[%c0, %c0_0] : memref<1x128xf32, #tpu.memory_space<vmem>>, vector<1x128xf32>
    %8 = vector.broadcast %6 : vector<2x1xf32> to vector<2x128xf32>
    %9 = vector.broadcast %7 : vector<1x128xf32> to vector<2x128xf32>
    %10 = arith.addf %8, %9 : vector<2x128xf32>
    %c0_1 = arith.constant 0 : index
    %c0_2 = arith.constant 0 : index
    %11 = vector.load %arg1[%c0_1, %c0_2] : memref<1x128xf32, #tpu.memory_space<vmem>>, vector<1x128xf32>
    %12 = vector.broadcast %11 : vector<1x128xf32> to vector<2x128xf32>
    %13 = arith.mulf %10, %12 : vector<2x128xf32>
    %c0_3 = arith.constant 0 : index
    %c0_4 = arith.constant 0 : index
    %14 = vector.load %arg2[%c0_3, %c0_4] : memref<1x128xf32, #tpu.memory_space<vmem>>, vector<1x128xf32>
    %cst_5 = arith.constant 0.000000e+00 : f32
    %15 = vector.broadcast %cst_5 : f32 to vector<1x128xf32>
    %16 = arith.cmpf oeq, %14, %15 : vector<1x128xf32>
    %17 = math.sin %13 : vector<2x128xf32>
    %18 = math.cos %13 : vector<2x128xf32>
    %19 = vector.shape_cast %16 : vector<1x128xi1> to vector<1x128xi1>
    %20 = vector.broadcast %19 : vector<1x128xi1> to vector<2x128xi1>
    %21 = arith.select %20, %17, %18 : vector<2x128xi1>, vector<2x128xf32>
    %c0_6 = arith.constant 0 : index
    %c0_7 = arith.constant 0 : index
    %22 = vector.load %arg4[%c0_6, %c0_7] : memref<2x128xf32, #tpu.memory_space<vmem>>, vector<2x128xf32>
    tpu.vector_store %arg4[%c0_6, %c0_7], %21 {strides = array<i32>} : memref<2x128xf32, #tpu.memory_space<vmem>>, vector<2x128xf32>,
    return
  }
  func.func @transform_0(%arg0: i32) -> (i32, i32) {
    %c0_i32 = arith.constant 0 : i32
    %c0_i32_0 = arith.constant 0 : i32
    %c0_i32_1 = arith.constant 0 : i32
    return %c0_i32, %c0_i32_0 : i32, i32
  }
  func.func @transform_1(%arg0: i32) -> (i32, i32) {
    %c0_i32 = arith.constant 0 : i32
    %c0_i32_0 = arith.constant 0 : i32
    %c0_i32_1 = arith.constant 0 : i32
    return %c0_i32, %c0_i32_0 : i32, i32
  }
  func.func @transform_2(%arg0: i32) -> (i32, i32) {
    %c0_i32 = arith.constant 0 : i32
    %c0_i32_0 = arith.constant 0 : i32
    %c0_i32_1 = arith.constant 0 : i32
    return %c0_i32, %c0_i32_0 : i32, i32
  }
  func.func @transform_3(%arg0: i32) -> (i32, i32) {
    %c0_i32 = arith.constant 0 : i32
    %c0_i32_0 = arith.constant 0 : i32
    return %arg0, %c0_i32 : i32, i32
  }
}

</mosaic_0001>

<llo_original>
// kernel: tpu_custom_call.1
$region0: #{tpu_custom_call.1}
  #allocation0 [shape = 'u32[]', space=smem, size = 0x4, offset = 0x4, fixed_abs, tag = 'smem constant byte address 0x4 - core index']
  #allocation1 [shape = 'u32[72,128]{1,0:T(1,128)}', space=vmem, size = 0x9000, scoped, tag = 'internal scratch']
  %s0 = inlined_call_operand.hbm [shape: f32[1,128], index: 0, kind: input, shape index: {}]
  %s1 = inlined_call_operand.hbm [shape: f32[1,128], index: 1, kind: input, shape index: {}]
  %s2 = inlined_call_operand.vmem [shape: f32[1,128], index: 2, kind: input, shape index: {}]
  %s3 = inlined_call_operand.hbm [shape: f32[2,128], index: 3, kind: output, shape index: {}]
  %s4 = sld [smem:[#allocation0]]
  $region30: #{tpu_custom_call.1} parent=0
    _
  %s6 = ssub.s32 1, %s4
  %s7 = scalar_select 0, %s6, %s4
  $region1: #{tpu_custom_call.1} parent=0
    #allocation2 [shape = 'u8[512]{0}', space=vmem, size = 0x400, scoped, tag = 'input window, operand 0, single buffered']
    #allocation3 [shape = 's32[1]{0}', space=sflag, size = 0x4, scoped, tag = 'scoped memory for tpu_custom_call.1']
    #allocation4 [shape = 's32[1]{0}', space=sflag, size = 0x4, scoped, tag = 'scoped memory for tpu_custom_call.1']
    #allocation5 [shape = 'u8[512]{0}', space=vmem, size = 0x400, scoped, tag = 'input window, operand 1, single buffered']
    #allocation6 [shape = 's32[1]{0}', space=sflag, size = 0x4, scoped, tag = 'scoped memory for tpu_custom_call.1']
    #allocation7 [shape = 'u8[1024]{0}', space=vmem, size = 0x400, scoped, tag = 'output window, operand 0, single buffered']
    %8 = vsyncpa [#allocation3], 0
    %9 = vsyncpa [#allocation6], 0
    %10 = vsyncpa [#allocation4], 0
    // Predicated region
    $region2: #{tpu_custom_call.1} parent=1 // pred_check
      _
    $region3: #{tpu_custom_call.1} parent=1 // pred_check_branch
      %12 = sbr.rel (0) target = $region5
    $region4: #{tpu_custom_call.1} parent=1 // pred_region
      %14 = vsyncadd [#allocation3], 0
      %s16 = sshll.u32 %s0, 4
      %s17 = int_to_ptr.hbm [resolvable:$true] %s16
      %s18 = sshll.u32 [#allocation2], 4
      %s19 = int_to_ptr.vmem [resolvable:$true] %s18
      %21 = dma.hbm_to_vmem [thread:$0]  %s17, 16, %s19, [#allocation3]
    $region5: #{tpu_custom_call.1} parent=1 // pred_fallthru
      _
    // Predicated region
    $region6: #{tpu_custom_call.1} parent=1 // pred_check
      _
    $region7: #{tpu_custom_call.1} parent=1 // pred_check_branch
      %23 = sbr.rel (0) target = $region9
    $region8: #{tpu_custom_call.1} parent=1 // pred_region
      %25 = vsyncadd [#allocation6], 0
      %s27 = sshll.u32 %s1, 4
      %s28 = int_to_ptr.hbm [resolvable:$true] %s27
      %s29 = sshll.u32 [#allocation5], 4
      %s30 = int_to_ptr.vmem [resolvable:$true] %s29
      %32 = dma.hbm_to_vmem [thread:$0]  %s28, 16, %s30, [#allocation6]
    $region9: #{tpu_custom_call.1} parent=1 // pred_fallthru
      _
    // Predicated region
    $region10: #{tpu_custom_call.1} parent=1 // pred_check
      _
    $region11: #{tpu_custom_call.1} parent=1 // pred_check_branch
      %34 = sbr.rel (0) target = $region13
    $region12: #{tpu_custom_call.1} parent=1 // pred_region
      _
    $region13: #{tpu_custom_call.1} parent=1 // pred_fallthru
      _
    // Predicated region
    $region14: #{tpu_custom_call.1} parent=1 // pred_check
      _
    $region15: #{tpu_custom_call.1} parent=1 // pred_check_branch
      %36 = sbr.rel (0) target = $region17
    $region16: #{tpu_custom_call.1} parent=1 // pred_region
      %38 = dma.done [#allocation3], 16
    $region17: #{tpu_custom_call.1} parent=1 // pred_fallthru
      _
    // Predicated region
    $region18: #{tpu_custom_call.1} parent=1 // pred_check
      _
    $region19: #{tpu_custom_call.1} parent=1 // pred_check_branch
      %40 = sbr.rel (0) target = $region21
    $region20: #{tpu_custom_call.1} parent=1 // pred_region
      %42 = dma.done [#allocation6], 16
    $region21: #{tpu_custom_call.1} parent=1 // pred_fallthru
      _
    %s43 = smul.u32 0, 2
    %v44 = vlaneseq
    %v45 = vshrl.u32 %v44, 7
    %v46 = vstv %s43
    %v47 = vadd.s32 %v45, %v46
    %v48 = vcvt.s32.f32 %v47
    %v49 = vmul.f32 %v48, 4.0
    %v50 = vld [vmem:[%s2] sm:$0x1]
    %v52 = vperm.slane %v50, 0
    %v54 = vadd.f32 %v49, %v52
    %v55 = vld [vmem:[#allocation2] sm:$0x1]
    %v57 = vperm.slane %v55, 0
    %v59 = vmul.f32 %v54, %v57
    %v60 = vld [vmem:[#allocation5] sm:$0x1]
    %vm61 = vcmp.eq.f32.partialorder %v60, 0.0
    %v62 = vand.u32 2147483647, %v59
    %vm63 = vcmp.le.f32.partialorder %v62, 0.7853982
    %vm64 = vcmp.lt.s32.totalorder %v59, 0
    %v65 = vand.u32 %v59, 2139095040
    %v66 = vshrl.u32 %v65, 23
    %v67 = vsub.s32 %v66, 127
    %v68 = vand.u32 2147483647, %v59
    %v69 = vand.u32 %v68, 8388607
    %v70 = vor.u32 %v69, 8388608
    %v71 = vsub.s32 0, %v70
    %v72 = vadd.s32 %v67, 1
    %vm73 = vcmp.gt.s32.totalorder %v72, 0
    %v74 = vsel %vm73, %v72, 0
    %v75 = vshrl.u32 %v74, 5
    %v76 = vand.u32 %v74, 31
    %v77 = vsub.s32 32, %v76
    %v78 = vshrl.u32 683565275, %v77
    %v79 = vshll.u32 683565275, %v76
    %v80 = vshrl.u32 2475754826, %v77
    %v81 = vor.u32 %v79, %v80
    %v82 = vshll.u32 2475754826, %v76
    %v83 = vshrl.u32 2131351028, %v77
    %v84 = vor.u32 %v82, %v83
    %v85 = vshll.u32 2131351028, %v76
    %v86 = vshrl.u32 2102212464, %v77
    %v87 = vor.u32 %v85, %v86
    %v88 = vshll.u32 2102212464, %v76
    %v89 = vshrl.u32 920167782, %v77
    %v90 = vor.u32 %v88, %v89
    %v91 = vshll.u32 920167782, %v76
    %v92 = vshrl.u32 1326507024, %v77
    %v93 = vor.u32 %v91, %v92
    %vm94 = vcmp.lt.s32.totalorder %v75, 1
    %vm95 = vcmp.lt.s32.totalorder %v75, 2
    %vm96 = vcmp.lt.s32.totalorder %v75, 3
    %vm97 = vcmp.lt.s32.totalorder %v75, 4
    %v98 = vsel %vm94, %v78, %v81
    %v99 = vsel %vm97, %v87, 2102212464
    %v100 = vsel %vm96, %v84, %v99
    %v101 = vsel %vm95, %v98, %v100
    %v102 = vsel %vm94, %v81, %v84
    %v103 = vsel %vm97, %v90, 920167782
    %v104 = vsel %vm96, %v87, %v103
    %v105 = vsel %vm95, %v102, %v104
    %v106 = vsel %vm94, %v84, %v87
    %v107 = vsel %vm97, %v93, 1326507024
    %v108 = vsel %vm96, %v90, %v107
    %v109 = vsel %vm95, %v106, %v108
    %v110 = vshll.u32 %v70, 8
    %v111 = vand.u32 %v110, 65535
    %v112 = vshrl.u32 %v110, 16
    %v113 = vand.u32 %v109, 65535
    %v114 = vshrl.u32 %v109, 16
    %v115 = vmul.u32 %v111, %v113
    %v116 = vmul.u32 %v111, %v114
    %v117 = vmul.u32 %v112, %v113
    %v118 = vmul.u32 %v112, %v114
    %v119 = vshll.u32 %v116, 16
    %v120 = vshrl.u32 %v116, 16
    %v121 = vshll.u32 %v117, 16
    %v122 = vshrl.u32 %v117, 16
    %vm123 = vc.u32 %v115, %v119
    %v124 = vsel %vm123, 1, 0
    %v125 = vadd.s32 %v115, %v119
    %v126 = vadd.s32 %v118, %v124
    %vm127 = vc.u32 %v125, %v121
    %v128 = vsel %vm127, 1, 0
    %v129 = vadd.s32 %v125, %v121
    %v130 = vadd.s32 %v126, %v128
    %v131 = vadd.s32 %v130, %v120
    %v132 = vadd.s32 %v131, %v122
    %v133 = vand.u32 %v110, 65535
    %v134 = vshrl.u32 %v110, 16
    %v135 = vand.u32 %v105, 65535
    %v136 = vshrl.u32 %v105, 16
    %v137 = vmul.u32 %v133, %v135
    %v138 = vmul.u32 %v133, %v136
    %v139 = vmul.u32 %v134, %v135
    %v140 = vmul.u32 %v134, %v136
    %v141 = vshll.u32 %v138, 16
    %v142 = vshrl.u32 %v138, 16
    %v143 = vshll.u32 %v139, 16
    %v144 = vshrl.u32 %v139, 16
    %vm145 = vc.u32 %v137, %v141
    %v146 = vsel %vm145, 1, 0
    %v147 = vadd.s32 %v137, %v141
    %v148 = vadd.s32 %v140, %v146
    %vm149 = vc.u32 %v147, %v143
    %v150 = vsel %vm149, 1, 0
    %v151 = vadd.s32 %v147, %v143
    %v152 = vadd.s32 %v148, %v150
    %v153 = vadd.s32 %v152, %v142
    %v154 = vadd.s32 %v153, %v144
    %v155 = vmul.u32 %v110, %v101
    %v156 = vadd.s32 %v132, %v151
    %vm157 = vc.u32 %v132, %v151
    %v158 = vadd.s32 %v154, 1
    %v159 = vsel %vm157, %v158, %v154
    %v160 = vadd.s32 %v155, %v159
    %v161 = vadd.s32 %v160, 536870912
    %v162 = vshrl.u32 %v161, 30
    %v163 = vshll.u32 %v162, 30
    %v164 = vsub.s32 %v160, %v163
    %vm165 = vcmp.lt.s32.totalorder %v164, 0
    %v166 = vsub.s32 0, %v164
    %v167 = vsel %vm165, %v166, %v164
    %v168 = vclz %v167
    %v169 = vsub.s32 %v168, 2
    %vm170 = vcmp.gt.s32.totalorder 0, %v169
    %v171 = vsel %vm170, 0, %v169
    %v172 = vsub.s32 32, %v171
    %v173 = vshll.u32 %v164, %v171
    %v174 = vshrl.u32 %v156, %v172
    %v175 = vor.u32 %v173, %v174
    %v176 = vsub.s32 4294967266, %v171
    %v177 = vadd.s32 %v176, 127
    %v178 = vshll.u32 %v177, 23
    %v179 = vor.u32 4788187, %v178
    %v180 = vand.u32 2147483647, %v179
    %v182 = vcvt.s32.f32 %v175
    %v183 = vmul.f32 %v182, %v180
    %v184 = vxor.u32 %v183, 2147483648
    %v185 = vsel %vm64, %v184, %v183
    %v186 = vsub.s32 4, %v162
    %v187 = vsel %vm64, %v186, %v162
    %v188 = vsel %vm63, %v59, %v185
    %v189 = vsel %vm63, 0, %v187
    %v190 = vmul.f32 %v188, %v188
    %v191 = vmul.f32 %v190, -0.001358992
    %v192 = vadd.f32 %v191, 0.041655596
    %v193 = vmul.f32 %v190, %v192
    %v194 = vadd.f32 %v193, -0.4999988
    %v195 = vmul.f32 %v190, %v194
    %v196 = vadd.f32 1.0, %v195
    %v197 = vmul.f32 %v188, %v188
    %v198 = vmul.f32 %v197, -0.00019511016
    %v199 = vadd.f32 %v198, 0.008332121
    %v200 = vmul.f32 %v197, %v199
    %v201 = vadd.f32 %v200, -0.16666654
    %v202 = vmul.f32 %v197, %v201
    %v203 = vadd.f32 %v202, 1.0
    %v204 = vmul.f32 %v203, %v188
    %vm205 = vweird.f32 %v59
    %v206 = vadd.s32 %v189, 3
    %v207 = vand.u32 %v206, 3
    %vm208 = vcmp.lt.s32.totalorder %v207, 2
    %vm209 = vcmp.eq.s32.totalorder %v207, 0
    %v210 = vxor.u32 %v204, 2147483648
    %v211 = vsel %vm209, %v196, %v210
    %vm212 = vcmp.eq.s32.totalorder %v207, 2
    %v213 = vxor.u32 %v196, 2147483648
    %v214 = vsel %vm212, %v213, %v204
    %v215 = vsel %vm208, %v211, %v214
    %v216 = vsel %vm205, nan, %v215
    %v217 = vand.u32 2147483647, %v59
    %vm218 = vcmp.le.f32.partialorder %v217, 0.7853982
    %vm219 = vcmp.lt.s32.totalorder %v59, 0
    %v220 = vand.u32 %v59, 2139095040
    %v221 = vshrl.u32 %v220, 23
    %v222 = vsub.s32 %v221, 127
    %v223 = vand.u32 2147483647, %v59
    %v224 = vand.u32 %v223, 8388607
    %v225 = vor.u32 %v224, 8388608
    %v226 = vsub.s32 0, %v225
    %v227 = vadd.s32 %v222, 1
    %vm228 = vcmp.gt.s32.totalorder %v227, 0
    %v229 = vsel %vm228, %v227, 0
    %v230 = vshrl.u32 %v229, 5
    %v231 = vand.u32 %v229, 31
    %v232 = vsub.s32 32, %v231
    %v233 = vshrl.u32 683565275, %v232
    %v234 = vshll.u32 683565275, %v231
    %v235 = vshrl.u32 2475754826, %v232
    %v236 = vor.u32 %v234, %v235
    %v237 = vshll.u32 2475754826, %v231
    %v238 = vshrl.u32 2131351028, %v232
    %v239 = vor.u32 %v237, %v238
    %v240 = vshll.u32 2131351028, %v231
    %v241 = vshrl.u32 2102212464, %v232
    %v242 = vor.u32 %v240, %v241
    %v243 = vshll.u32 2102212464, %v231
    %v244 = vshrl.u32 920167782, %v232
    %v245 = vor.u32 %v243, %v244
    %v246 = vshll.u32 920167782, %v231
    %v247 = vshrl.u32 1326507024, %v232
    %v248 = vor.u32 %v246, %v247
    %vm249 = vcmp.lt.s32.totalorder %v230, 1
    %vm250 = vcmp.lt.s32.totalorder %v230, 2
    %vm251 = vcmp.lt.s32.totalorder %v230, 3
    %vm252 = vcmp.lt.s32.totalorder %v230, 4
    %v253 = vsel %vm249, %v233, %v236
    %v254 = vsel %vm252, %v242, 2102212464
    %v255 = vsel %vm251, %v239, %v254
    %v256 = vsel %vm250, %v253, %v255
    %v257 = vsel %vm249, %v236, %v239
    %v258 = vsel %vm252, %v245, 920167782
    %v259 = vsel %vm251, %v242, %v258
    %v260 = vsel %vm250, %v257, %v259
    %v261 = vsel %vm249, %v239, %v242
    %v262 = vsel %vm252, %v248, 1326507024
    %v263 = vsel %vm251, %v245, %v262
    %v264 = vsel %vm250, %v261, %v263
    %v265 = vshll.u32 %v225, 8
    %v266 = vand.u32 %v265, 65535
    %v267 = vshrl.u32 %v265, 16
    %v268 = vand.u32 %v264, 65535
    %v269 = vshrl.u32 %v264, 16
    %v270 = vmul.u32 %v266, %v268
    %v271 = vmul.u32 %v266, %v269
    %v272 = vmul.u32 %v267, %v268
    %v273 = vmul.u32 %v267, %v269
    %v274 = vshll.u32 %v271, 16
    %v275 = vshrl.u32 %v271, 16
    %v276 = vshll.u32 %v272, 16
    %v277 = vshrl.u32 %v272, 16
    %vm278 = vc.u32 %v270, %v274
    %v279 = vsel %vm278, 1, 0
    %v280 = vadd.s32 %v270, %v274
    %v281 = vadd.s32 %v273, %v279
    %vm282 = vc.u32 %v280, %v276
    %v283 = vsel %vm282, 1, 0
    %v284 = vadd.s32 %v280, %v276
    %v285 = vadd.s32 %v281, %v283
    %v286 = vadd.s32 %v285, %v275
    %v287 = vadd.s32 %v286, %v277
    %v288 = vand.u32 %v265, 65535
    %v289 = vshrl.u32 %v265, 16
    %v290 = vand.u32 %v260, 65535
    %v291 = vshrl.u32 %v260, 16
    %v292 = vmul.u32 %v288, %v290
    %v293 = vmul.u32 %v288, %v291
    %v294 = vmul.u32 %v289, %v290
    %v295 = vmul.u32 %v289, %v291
    %v296 = vshll.u32 %v293, 16
    %v297 = vshrl.u32 %v293, 16
    %v298 = vshll.u32 %v294, 16
    %v299 = vshrl.u32 %v294, 16
    %vm300 = vc.u32 %v292, %v296
    %v301 = vsel %vm300, 1, 0
    %v302 = vadd.s32 %v292, %v296
    %v303 = vadd.s32 %v295, %v301
    %vm304 = vc.u32 %v302, %v298
    %v305 = vsel %vm304, 1, 0
    %v306 = vadd.s32 %v302, %v298
    %v307 = vadd.s32 %v303, %v305
    %v308 = vadd.s32 %v307, %v297
    %v309 = vadd.s32 %v308, %v299
    %v310 = vmul.u32 %v265, %v256
    %v311 = vadd.s32 %v287, %v306
    %vm312 = vc.u32 %v287, %v306
    %v313 = vadd.s32 %v309, 1
    %v314 = vsel %vm312, %v313, %v309
    %v315 = vadd.s32 %v310, %v314
    %v316 = vadd.s32 %v315, 536870912
    %v317 = vshrl.u32 %v316, 30
    %v318 = vshll.u32 %v317, 30
    %v319 = vsub.s32 %v315, %v318
    %vm320 = vcmp.lt.s32.totalorder %v319, 0
    %v321 = vsub.s32 0, %v319
    %v322 = vsel %vm320, %v321, %v319
    %v323 = vclz %v322
    %v324 = vsub.s32 %v323, 2
    %vm325 = vcmp.gt.s32.totalorder 0, %v324
    %v326 = vsel %vm325, 0, %v324
    %v327 = vsub.s32 32, %v326
    %v328 = vshll.u32 %v319, %v326
    %v329 = vshrl.u32 %v311, %v327
    %v330 = vor.u32 %v328, %v329
    %v331 = vsub.s32 4294967266, %v326
    %v332 = vadd.s32 %v331, 127
    %v333 = vshll.u32 %v332, 23
    %v334 = vor.u32 4788187, %v333
    %v335 = vand.u32 2147483647, %v334
    %v337 = vcvt.s32.f32 %v330
    %v338 = vmul.f32 %v337, %v335
    %v339 = vxor.u32 %v338, 2147483648
    %v340 = vsel %vm219, %v339, %v338
    %v341 = vsub.s32 4, %v317
    %v342 = vsel %vm219, %v341, %v317
    %v343 = vsel %vm218, %v59, %v340
    %v344 = vsel %vm218, 0, %v342
    %v345 = vmul.f32 %v343, %v343
    %v346 = vmul.f32 %v345, -0.001358992
    %v347 = vadd.f32 %v346, 0.041655596
    %v348 = vmul.f32 %v345, %v347
    %v349 = vadd.f32 %v348, -0.4999988
    %v350 = vmul.f32 %v345, %v349
    %v351 = vadd.f32 1.0, %v350
    %v352 = vmul.f32 %v343, %v343
    %v353 = vmul.f32 %v352, -0.00019511016
    %v354 = vadd.f32 %v353, 0.008332121
    %v355 = vmul.f32 %v352, %v354
    %v356 = vadd.f32 %v355, -0.16666654
    %v357 = vmul.f32 %v352, %v356
    %v358 = vadd.f32 %v357, 1.0
    %v359 = vmul.f32 %v358, %v343
    %vm360 = vweird.f32 %v59
    %v361 = vand.u32 %v344, 3
    %vm362 = vcmp.lt.s32.totalorder %v361, 2
    %vm363 = vcmp.eq.s32.totalorder %v361, 0
    %v364 = vxor.u32 %v359, 2147483648
    %v365 = vsel %vm363, %v351, %v364
    %vm366 = vcmp.eq.s32.totalorder %v361, 2
    %v367 = vxor.u32 %v351, 2147483648
    %v368 = vsel %vm366, %v367, %v359
    %v369 = vsel %vm362, %v365, %v368
    %v370 = vsel %vm360, nan, %v369
    %v371 = vsel %vm61, 1, 0
    %v372 = vperm.slane %v371, 0
    %vm373 = vcmp.eq.s32.totalorder %v372, 1
    %v374 = vsel %vm373, %v216, %v370
    %375 = vst [vmem:[#allocation7] sm:$0x3] %v374
    // Predicated region
    $region22: #{tpu_custom_call.1} parent=1 // pred_check
      _
    $region23: #{tpu_custom_call.1} parent=1 // pred_check_branch
      %377 = sbr.rel (0) target = $region25
    $region24: #{tpu_custom_call.1} parent=1 // pred_region
      %379 = vsyncadd [#allocation4], 0
      %s381 = sshll.u32 [#allocation7], 4
      %s382 = int_to_ptr.vmem [resolvable:$true] %s381
      %s383 = sshll.u32 %s3, 4
      %s384 = int_to_ptr.hbm [resolvable:$true] %s383
      %386 = dma.vmem_to_hbm [thread:$0]  %s382, 32, %s384, [#allocation4]
    $region25: #{tpu_custom_call.1} parent=1 // pred_fallthru
      _
    // Predicated region
    $region26: #{tpu_custom_call.1} parent=1 // pred_check
      _
    $region27: #{tpu_custom_call.1} parent=1 // pred_check_branch
      %388 = sbr.rel (0) target = $region29
    $region28: #{tpu_custom_call.1} parent=1 // pred_region
      %390 = dma.done [#allocation4], 32
    $region29: #{tpu_custom_call.1} parent=1 // pred_fallthru
      _
    %391 = vsyncpa [#allocation3], 1
    %392 = vsyncpa [#allocation6], 1
    %393 = vsyncpa [#allocation4], 1

</llo_original>
